<compile_context>
chip_gen: v7x
topology: tpu7x:2x2x1
jax: 0.10.0
libtpu: 0.0.40
codegen_flags: <defaults>
</compile_context>

<pallas_src>
import jax
import jax.numpy as jnp
from jax.experimental import pallas as pl
from jax.experimental.pallas import tpu as pltpu

EPS = 1e-5


def _round_up(x, m):
    return ((x + m - 1) // m) * m


def _layernorm(y, p_ref):
    """LayerNorm over the last dim of f32 `y`; p_ref rows = [bias, gamma, beta]."""
    inv_h = 1.0 / float(y.shape[-1])
    mean = jnp.sum(y, axis=-1, keepdims=True) * inv_h
    centered = y - mean
    var = jnp.sum(centered * centered, axis=-1, keepdims=True) * inv_h
    inv = jax.lax.rsqrt(var + EPS)
    return centered * inv * p_ref[1:2, :] + p_ref[2:3, :]


def _make_single_step_kernel(n_res):
    """W fully VMEM-resident: one grid axis over rows, no accumulator."""

    def kernel(x_ref, w_ref, p_ref, *rest):
        res_refs = rest[:n_res]
        o_ref = rest[n_res]
        # bf16 x bf16 on the MXU, f32 accumulation.
        y = jnp.dot(x_ref[...], w_ref[...], preferred_element_type=jnp.float32)
        y = y + p_ref[0:1, :]                        # bias, (1, H) broadcast
        for r in res_refs:                           # only streams that exist
            y = y + r[...].astype(jnp.float32)
        o_ref[...] = _layernorm(y, p_ref).astype(o_ref.dtype)

    return kernel


def _make_accum_kernel(n_res):
    """K-tiled W: grid = (rows, k), f32 accumulator scratch, epilogue on last k."""

    def kernel(x_ref, w_ref, p_ref, *rest):
        res_refs = rest[:n_res]
        o_ref = rest[n_res]
        acc_ref = rest[n_res + 1]
        k = pl.program_id(1)

        @pl.when(k == 0)
        def _():
            acc_ref[...] = jnp.zeros_like(acc_ref)

        acc_ref[...] += jnp.dot(x_ref[...], w_ref[...],
                                preferred_element_type=jnp.float32)

        @pl.when(k == pl.num_programs(1) - 1)
        def _():
            y = acc_ref[...] + p_ref[0:1, :]
            for r in res_refs:
                y = y + r[...].astype(jnp.float32)
            o_ref[...] = _layernorm(y, p_ref).astype(o_ref.dtype)

    return kernel


def layer_with_norm(x, w, b, gamma, beta, l_input=None, t_input=None,
                    *, w_resident_bytes=None):
    """y = LayerNorm(x @ W + b [+ l_input] [+ t_input]).

    x: [B, S, H_in]; w: [H_in, H_out]; b/gamma/beta: [H_out];
    l_input/t_input: optional [B, S, H_out] residual streams.
    """
    B, S, H_in = x.shape
    H_out = w.shape[1]
    M = B * S
    out_dtype = x.dtype
    out_isz = jnp.dtype(out_dtype).itemsize

    # Per-generation VMEM cap (~80% of physical: ~102 MiB v5e/v6e, ~51 MiB v7x).
    try:
        vmem_cap = int(0.8 * pltpu.get_tpu_info().vmem_capacity_bytes)
    except Exception:  # conservative fallback if the query is unavailable
        vmem_cap = 64 << 20
    vmem_cap = max(vmem_cap, 16 << 20)

    # bf16 operands for the MXU; LayerNorm math stays f32 inside the kernel.
    x2 = x.reshape(M, H_in).astype(jnp.bfloat16)
    wp = w.astype(jnp.bfloat16)
    params = jnp.stack([b, gamma, beta]).astype(jnp.float32)   # (3, H_out)

    # Only stream residuals that actually exist (specialized kernel variant).
    residuals = []
    for r in (l_input, t_input):
        if r is not None:
            residuals.append(r.reshape(M, H_out))
    n_res = len(residuals)
    res_isz = jnp.dtype(residuals[0].dtype).itemsize if residuals else 0

    # ---- K (H_in) tiling: only when W would not comfortably sit in VMEM ----
    budget_w = vmem_cap // 4 if w_resident_bytes is None else int(w_resident_bytes)
    if H_in * H_out * 2 <= budget_w:
        k_blocks, tk, hin_p = 1, H_in, H_in          # full-extent K, no padding
    else:
        tk = 512                                     # lane-aligned K chunks
        while tk > 128 and tk * H_out * 2 > max(budget_w // 2, 128 * H_out * 2):
            tk //= 2
        hin_p = _round_up(H_in, tk)
        k_blocks = hin_p // tk
        if hin_p != H_in:                            # zero-pad contracted dim only
            x2 = jnp.pad(x2, ((0, 0), (0, hin_p - H_in)))
            wp = jnp.pad(wp, ((0, hin_p - H_in), (0, 0)))

    # ---- row tile derived from the VMEM budget (bf16 sublane multiple = 16) ----
    def vmem_need(tm):
        need = 2 * tm * tk * 2                       # x blocks (2 bufs, bf16)
        need += 2 * tk * H_out * 2                   # W blocks (conservatively 2 bufs)
        need += 2 * 3 * H_out * 4                    # packed bias/gamma/beta
        need += 2 * n_res * tm * H_out * res_isz     # residual blocks
        need += 2 * tm * H_out * out_isz             # output blocks
        need += (tm * H_out * 4) if k_blocks > 1 else 0   # f32 accumulator scratch
        need += 3 * tm * H_out * 4                   # f32 temporaries (LayerNorm)
        return need

    tm_eff = 16
    for cand in (64, 128, 256, 512, 1024):
        if vmem_need(cand) <= vmem_cap:
            tm_eff = cand
    tm_eff = min(tm_eff, _round_up(M, 16))
    if pl.cdiv(M, tm_eff) < 2 and M > 16:
        # >=2 row blocks so both v7x TensorCores get work on the parallel axis.
        tm_eff = max(16, _round_up(pl.cdiv(M, 2), 16))
    m_blocks = pl.cdiv(M, tm_eff)

    if k_blocks == 1:
        grid = (m_blocks,)
        in_specs = [
            pl.BlockSpec((tm_eff, hin_p), lambda i: (i, 0)),            # x rows
            pl.BlockSpec((hin_p, H_out), lambda i: (0, 0),
                         pipeline_mode=pl.Buffered(1)),                 # resident W
            pl.BlockSpec((3, H_out), lambda i: (0, 0),
                         pipeline_mode=pl.Buffered(1)),                 # b/gamma/beta
        ] + [pl.BlockSpec((tm_eff, H_out), lambda i: (i, 0)) for _ in residuals]
        out_specs = pl.BlockSpec((tm_eff, H_out), lambda i: (i, 0))
        scratch_shapes = []
        dim_sem = ("parallel",)
        kernel = _make_single_step_kernel(n_res)
    else:
        grid = (m_blocks, k_blocks)                                     # K last
        in_specs = [
            pl.BlockSpec((tm_eff, tk), lambda i, k: (i, k)),            # x rows x K
            pl.BlockSpec((tk, H_out), lambda i, k: (k, 0)),             # W K-slab
            pl.BlockSpec((3, H_out), lambda i, k: (0, 0),
                         pipeline_mode=pl.Buffered(1)),                 # b/gamma/beta
        ] + [pl.BlockSpec((tm_eff, H_out), lambda i, k: (i, 0)) for _ in residuals]
        out_specs = pl.BlockSpec((tm_eff, H_out), lambda i, k: (i, 0))
        scratch_shapes = [pltpu.VMEM((tm_eff, H_out), jnp.float32)]
        dim_sem = ("parallel", "arbitrary")
        kernel = _make_accum_kernel(n_res)

    out = pl.pallas_call(
        kernel,
        out_shape=jax.ShapeDtypeStruct((M, H_out), out_dtype),
        grid_spec=pltpu.PrefetchScalarGridSpec(
            num_scalar_prefetch=0,
            grid=grid,
            in_specs=in_specs,
            out_specs=out_specs,
            scratch_shapes=scratch_shapes,
        ),
        compiler_params=pltpu.CompilerParams(
            dimension_semantics=dim_sem,
            vmem_limit_bytes=int(vmem_cap),
        ),
    )(x2, wp, params, *residuals)

    return out.reshape(B, S, H_out)


def _reference(x, w, b, gamma, beta, l_input=None, t_input=None,
               *, matmul_dtype=jnp.float32):
    """Pure-JAX reference; matmul_dtype=bfloat16 emulates the MXU input rounding."""
    xm = x.astype(matmul_dtype).astype(jnp.float32)
    wm = w.astype(matmul_dtype).astype(jnp.float32)
    y = jnp.einsum("bsh,hk->bsk", xm, wm,
                   precision=jax.lax.Precision.HIGHEST) + b.astype(jnp.float32)
    if l_input is not None:
        y = y + l_input.astype(jnp.float32)
    if t_input is not None:
        y = y + t_input.astype(jnp.float32)
    mean = jnp.mean(y, axis=-1, keepdims=True)
    var = jnp.mean((y - mean) ** 2, axis=-1, keepdims=True)
    return ((y - mean) * jax.lax.rsqrt(var + EPS)) * gamma + beta


if __name__ == "__main__":
    key = jax.random.PRNGKey(0)
    kx, kw, kb, kg, kbe, kl, kt, kx2, kw2, kl2 = jax.random.split(key, 10)

    # --- small config matching the module (batch=2, seq=8, hidden=32) ---
    B, S, H_in, H_out = 2, 8, 32, 32
    x = jax.random.normal(kx, (B, S, H_in), jnp.float32)
    w = jax.random.normal(kw, (H_in, H_out), jnp.float32) * 0.1
    b = jax.random.normal(kb, (H_out,), jnp.float32) * 0.1
    gamma = 1.0 + 0.05 * jax.random.normal(kg, (H_out,), jnp.float32)
    beta = 0.05 * jax.random.normal(kbe, (H_out,), jnp.float32)
    l_input = jax.random.normal(kl, (B, S, H_out), jnp.float32)
    t_input = jax.random.normal(kt, (B, S, H_out), jnp.float32)

    # Variant with both residual streams.
    out = jax.block_until_ready(layer_with_norm(x, w, b, gamma, beta, l_input, t_input))
    ref_bf16 = _reference(x, w, b, gamma, beta, l_input, t_input, matmul_dtype=jnp.bfloat16)
    ref_f32 = _reference(x, w, b, gamma, beta, l_input, t_input)
    assert out.shape == (B, S, H_out)
    assert jnp.allclose(out, ref_bf16, atol=2e-4, rtol=2e-4), "mismatch (with residuals)"
    assert jnp.allclose(out, ref_f32, atol=1e-1, rtol=1e-1), "far from f32 reference"

    # Specialized variant with no residual streams (nothing extra streamed).
    out0 = jax.block_until_ready(layer_with_norm(x, w, b, gamma, beta))
    ref0 = _reference(x, w, b, gamma, beta, matmul_dtype=jnp.bfloat16)
    assert jnp.allclose(out0, ref0, atol=2e-4, rtol=2e-4), "mismatch (no residuals)"

    # K-tiled accumulation path (forced tiny W-residency budget), one residual.
    B2, S2, H_in2, H_out2 = 2, 16, 512, 256
    x2 = jax.random.normal(kx2, (B2, S2, H_in2), jnp.float32)
    w2 = jax.random.normal(kw2, (H_in2, H_out2), jnp.float32) * 0.05
    b2 = 0.1 * jnp.ones((H_out2,), jnp.float32)
    g2 = jnp.ones((H_out2,), jnp.float32)
    be2 = jnp.zeros((H_out2,), jnp.float32)
    l2 = jax.random.normal(kl2, (B2, S2, H_out2), jnp.float32)
    outk = jax.block_until_ready(
        layer_with_norm(x2, w2, b2, g2, be2, l2, w_resident_bytes=32 * 1024))
    refk = _reference(x2, w2, b2, g2, be2, l2, matmul_dtype=jnp.bfloat16)
    assert jnp.allclose(outk, refk, atol=5e-4, rtol=5e-4), "mismatch (k-tiled path)"

    print("KERNEL_OK")
</pallas_src>

<mosaic_0001>
module attributes {stable_mosaic.version = 11 : i64} {
  func.func @kernel(%arg0: i32, %arg1: memref<16x32xbf16, #tpu.memory_space<vmem>>, %arg2: memref<32x32xbf16, #tpu.memory_space<vmem>>, %arg3: memref<3x32xf32, #tpu.memory_space<vmem>>, %arg4: memref<16x32xf32, #tpu.memory_space<vmem>>, %arg5: memref<16x32xf32, #tpu.memory_space<vmem>>, %arg6: memref<16x32xf32, #tpu.memory_space<vmem>>) attributes {dimension_semantics = [#tpu.dimension_semantics<parallel>], iteration_bounds = array<i64: 1>, scalar_prefetch = 0 : i64, scratch_operands = 0 : i64, tpu.core_type = #tpu.core_type<tc>, window_params = [{transform_indices = @transform_0, window_bounds = array<i64: 16, 32>}, {pipeline_mode = #tpu.pipeline_mode<synchronous>, transform_indices = @transform_1, window_bounds = array<i64: 32, 32>}, {pipeline_mode = #tpu.pipeline_mode<synchronous>, transform_indices = @transform_2, window_bounds = array<i64: 3, 32>}, {transform_indices = @transform_3, window_bounds = array<i64: 16, 32>}, {transform_indices = @transform_4, window_bounds = array<i64: 16, 32>}, {transform_indices = @transform_5, window_bounds = array<i64: 16, 32>}]} {
    %c0 = arith.constant 0 : index
    %c0_0 = arith.constant 0 : index
    %0 = vector.load %arg1[%c0, %c0_0] : memref<16x32xbf16, #tpu.memory_space<vmem>>, vector<16x32xbf16>
    %c0_1 = arith.constant 0 : index
    %c0_2 = arith.constant 0 : index
    %1 = vector.load %arg2[%c0_1, %c0_2] : memref<32x32xbf16, #tpu.memory_space<vmem>>, vector<32x32xbf16>
    %cst = arith.constant dense<0.000000e+00> : vector<16x32xf32>
    %2 = tpu.matmul %0, %1, %cst {dimension_numbers = #tpu.dot_dimension_numbers<[1], [0], [0], [1], [0, 0, 1, 1], [], []>} : vector<16x32xbf16>, vector<32x32xbf16>, vector<16x32xf32> -> vector<16x32xf32>
    %c0_3 = arith.constant 0 : index
    %c0_4 = arith.constant 0 : index
    %3 = vector.load %arg3[%c0_3, %c0_4] : memref<3x32xf32, #tpu.memory_space<vmem>>, vector<1x32xf32>
    %4 = vector.broadcast %3 : vector<1x32xf32> to vector<16x32xf32>
    %5 = arith.addf %2, %4 : vector<16x32xf32>
    %c0_5 = arith.constant 0 : index
    %c0_6 = arith.constant 0 : index
    %6 = vector.load %arg4[%c0_5, %c0_6] : memref<16x32xf32, #tpu.memory_space<vmem>>, vector<16x32xf32>
    %7 = arith.addf %5, %6 : vector<16x32xf32>
    %c0_7 = arith.constant 0 : index
    %c0_8 = arith.constant 0 : index
    %8 = vector.load %arg5[%c0_7, %c0_8] : memref<16x32xf32, #tpu.memory_space<vmem>>, vector<16x32xf32>
    %9 = arith.addf %7, %8 : vector<16x32xf32>
    %cst_9 = arith.constant dense<0.000000e+00> : vector<16xf32>
    %10 = vector.multi_reduction <add>, %9, %cst_9 [1] : vector<16x32xf32> to vector<16xf32>
    %11 = vector.shape_cast %10 : vector<16xf32> to vector<16x1xf32>
    %cst_10 = arith.constant 3.125000e-02 : f32
    %12 = vector.broadcast %cst_10 : f32 to vector<16x1xf32>
    %13 = arith.mulf %11, %12 : vector<16x1xf32>
    %14 = vector.broadcast %13 : vector<16x1xf32> to vector<16x32xf32>
    %15 = arith.subf %9, %14 : vector<16x32xf32>
    %16 = arith.mulf %15, %15 : vector<16x32xf32>
    %cst_11 = arith.constant dense<0.000000e+00> : vector<16xf32>
    %17 = vector.multi_reduction <add>, %16, %cst_11 [1] : vector<16x32xf32> to vector<16xf32>
    %18 = vector.shape_cast %17 : vector<16xf32> to vector<16x1xf32>
    %cst_12 = arith.constant 3.125000e-02 : f32
    %19 = vector.broadcast %cst_12 : f32 to vector<16x1xf32>
    %20 = arith.mulf %18, %19 : vector<16x1xf32>
    %cst_13 = arith.constant 9.99999974E-6 : f32
    %21 = vector.broadcast %cst_13 : f32 to vector<16x1xf32>
    %22 = arith.addf %20, %21 : vector<16x1xf32>
    %23 = math.rsqrt %22 : vector<16x1xf32>
    %24 = vector.broadcast %23 : vector<16x1xf32> to vector<16x32xf32>
    %25 = arith.mulf %15, %24 : vector<16x32xf32>
    %c1 = arith.constant 1 : index
    %c0_14 = arith.constant 0 : index
    %26 = vector.load %arg3[%c1, %c0_14] : memref<3x32xf32, #tpu.memory_space<vmem>>, vector<1x32xf32>
    %27 = vector.broadcast %26 : vector<1x32xf32> to vector<16x32xf32>
    %28 = arith.mulf %25, %27 : vector<16x32xf32>
    %c2 = arith.constant 2 : index
    %c0_15 = arith.constant 0 : index
    %29 = vector.load %arg3[%c2, %c0_15] : memref<3x32xf32, #tpu.memory_space<vmem>>, vector<1x32xf32>
    %30 = vector.broadcast %29 : vector<1x32xf32> to vector<16x32xf32>
    %31 = arith.addf %28, %30 : vector<16x32xf32>
    %c0_16 = arith.constant 0 : index
    %c0_17 = arith.constant 0 : index
    %32 = vector.load %arg6[%c0_16, %c0_17] : memref<16x32xf32, #tpu.memory_space<vmem>>, vector<16x32xf32>
    tpu.vector_store %arg6[%c0_16, %c0_17], %31 {strides = array<i32>} : memref<16x32xf32, #tpu.memory_space<vmem>>, vector<16x32xf32>,
    return
  }
  func.func @transform_0(%arg0: i32) -> (i32, i32) {
    %c0_i32 = arith.constant 0 : i32
    %c0_i32_0 = arith.constant 0 : i32
    return %arg0, %c0_i32 : i32, i32
  }
  func.func @transform_1(%arg0: i32) -> (i32, i32) {
    %c0_i32 = arith.constant 0 : i32
    %c0_i32_0 = arith.constant 0 : i32
    %c0_i32_1 = arith.constant 0 : i32
    return %c0_i32, %c0_i32_0 : i32, i32
  }
  func.func @transform_2(%arg0: i32) -> (i32, i32) {
    %c0_i32 = arith.constant 0 : i32
    %c0_i32_0 = arith.constant 0 : i32
    %c0_i32_1 = arith.constant 0 : i32
    return %c0_i32, %c0_i32_0 : i32, i32
  }
  func.func @transform_3(%arg0: i32) -> (i32, i32) {
    %c0_i32 = arith.constant 0 : i32
    %c0_i32_0 = arith.constant 0 : i32
    return %arg0, %c0_i32 : i32, i32
  }
  func.func @transform_4(%arg0: i32) -> (i32, i32) {
    %c0_i32 = arith.constant 0 : i32
    %c0_i32_0 = arith.constant 0 : i32
    return %arg0, %c0_i32 : i32, i32
  }
  func.func @transform_5(%arg0: i32) -> (i32, i32) {
    %c0_i32 = arith.constant 0 : i32
    %c0_i32_0 = arith.constant 0 : i32
    return %arg0, %c0_i32 : i32, i32
  }
}

</mosaic_0001>

<llo_original>
// kernel: tpu_custom_call.1
$region0: #{tpu_custom_call.1}
  #allocation0 [shape = 'u32[]', space=smem, size = 0x4, offset = 0x4, fixed_abs, tag = 'smem constant byte address 0x4 - core index']
  #allocation1 [shape = 'u32[144,128]{1,0:T(1,128)}', space=vmem, size = 0x12000, scoped, tag = 'internal scratch']
  %s0 = inlined_call_operand.hbm [shape: bf16[16,32], index: 0, kind: input, shape index: {}]
  %s1 = inlined_call_operand.hbm [shape: bf16[32,32], index: 1, kind: input, shape index: {}]
  %s2 = inlined_call_operand.hbm [shape: f32[3,32], index: 2, kind: input, shape index: {}]
  %s3 = inlined_call_operand.hbm [shape: f32[16,32], index: 3, kind: input, shape index: {}]
  %s4 = inlined_call_operand.hbm [shape: f32[16,32], index: 4, kind: input, shape index: {}]
  %s5 = inlined_call_operand.hbm [shape: f32[16,32], index: 5, kind: output, shape index: {}]
  %s6 = sld [smem:[#allocation0]]
  $region50: #{tpu_custom_call.1} parent=0
    _
  %s8 = ssub.s32 1, %s6
  %s9 = scalar_select 0, %s8, %s6
  $region1: #{tpu_custom_call.1} parent=0
    #allocation2 [shape = 'u8[4096]{0}', space=vmem, size = 0x1000, scoped, tag = 'input window, operand 0, single buffered']
    #allocation3 [shape = 's32[1]{0}', space=sflag, size = 0x4, scoped, tag = 'scoped memory for tpu_custom_call.1']
    #allocation4 [shape = 's32[1]{0}', space=sflag, size = 0x4, scoped, tag = 'scoped memory for tpu_custom_call.1']
    #allocation5 [shape = 'u8[8192]{0}', space=vmem, size = 0x2000, scoped, tag = 'input window, operand 1, single buffered']
    #allocation6 [shape = 's32[1]{0}', space=sflag, size = 0x4, scoped, tag = 'scoped memory for tpu_custom_call.1']
    #allocation7 [shape = 'u8[2048]{0}', space=vmem, size = 0x800, scoped, tag = 'input window, operand 2, single buffered']
    #allocation8 [shape = 'u8[8192]{0}', space=vmem, size = 0x2000, scoped, tag = 'input window, operand 3, single buffered']
    #allocation9 [shape = 's32[1]{0}', space=sflag, size = 0x4, scoped, tag = 'scoped memory for tpu_custom_call.1']
    #allocation10 [shape = 'u8[8192]{0}', space=vmem, size = 0x2000, scoped, tag = 'input window, operand 4, single buffered']
    #allocation11 [shape = 'u8[8192]{0}', space=vmem, size = 0x2000, scoped, tag = 'output window, operand 0, single buffered']
    %10 = vsyncpa [#allocation3], 0
    %11 = vsyncpa [#allocation6], 0
    %12 = vsyncpa [#allocation9], 0
    %13 = vsyncpa [#allocation4], 0
    // Predicated region
    $region2: #{tpu_custom_call.1} parent=1 // pred_check
      _
    $region3: #{tpu_custom_call.1} parent=1 // pred_check_branch
      %15 = sbr.rel (0) target = $region5
    $region4: #{tpu_custom_call.1} parent=1 // pred_region
      %s17 = ssub.s32 128, 128
      %18 = vsyncadd [#allocation3], %s17
      %s19 = sshll.u32 [#allocation2], 4
      %s20 = int_to_ptr.vmem [resolvable:$true] %s19
      %25 = dma.hbm_to_vmem [thread:$0]  %s0, 128, %s20, [#allocation3], 64, 64, 4
    $region5: #{tpu_custom_call.1} parent=1 // pred_fallthru
      _
    // Predicated region
    $region6: #{tpu_custom_call.1} parent=1 // pred_check
      _
    $region7: #{tpu_custom_call.1} parent=1 // pred_check_branch
      %27 = sbr.rel (0) target = $region9
    $region8: #{tpu_custom_call.1} parent=1 // pred_region
      %s29 = ssub.s32 256, 256
      %30 = vsyncadd [#allocation6], %s29
      %s31 = sshll.u32 [#allocation5], 4
      %s32 = int_to_ptr.vmem [resolvable:$true] %s31
      %37 = dma.hbm_to_vmem [thread:$0]  %s1, 256, %s32, [#allocation6], 64, 64, 4
    $region9: #{tpu_custom_call.1} parent=1 // pred_fallthru
      _
    // Predicated region
    $region10: #{tpu_custom_call.1} parent=1 // pred_check
      _
    $region11: #{tpu_custom_call.1} parent=1 // pred_check_branch
      %39 = sbr.rel (0) target = $region13
    $region12: #{tpu_custom_call.1} parent=1 // pred_region
      %s41 = ssub.s32 64, 64
      %42 = vsyncadd [#allocation6], %s41
      %s44 = sshll.u32 [#allocation7], 4
      %s45 = int_to_ptr.vmem [resolvable:$true] %s44
      %47 = dma.hbm_to_vmem [thread:$0]  %s2, 64, %s45, [#allocation6]
    $region13: #{tpu_custom_call.1} parent=1 // pred_fallthru
      _
    // Predicated region
    $region14: #{tpu_custom_call.1} parent=1 // pred_check
      _
    $region15: #{tpu_custom_call.1} parent=1 // pred_check_branch
      %49 = sbr.rel (0) target = $region17
    $region16: #{tpu_custom_call.1} parent=1 // pred_region
      %s51 = ssub.s32 256, 256
      %52 = vsyncadd [#allocation9], %s51
      %s53 = sshll.u32 [#allocation8], 4
      %s54 = int_to_ptr.vmem [resolvable:$true] %s53
      %59 = dma.hbm_to_vmem [thread:$0]  %s3, 256, %s54, [#allocation9], 128, 128, 8
    $region17: #{tpu_custom_call.1} parent=1 // pred_fallthru
      _
    // Predicated region
    $region18: #{tpu_custom_call.1} parent=1 // pred_check
      _
    $region19: #{tpu_custom_call.1} parent=1 // pred_check_branch
      %61 = sbr.rel (0) target = $region21
    $region20: #{tpu_custom_call.1} parent=1 // pred_region
      %s63 = ssub.s32 256, 256
      %64 = vsyncadd [#allocation9], %s63
      %s65 = sshll.u32 [#allocation10], 4
      %s66 = int_to_ptr.vmem [resolvable:$true] %s65
      %71 = dma.hbm_to_vmem [thread:$0]  %s4, 256, %s66, [#allocation9], 128, 128, 8
    $region21: #{tpu_custom_call.1} parent=1 // pred_fallthru
      _
    // Predicated region
    $region22: #{tpu_custom_call.1} parent=1 // pred_check
      _
    $region23: #{tpu_custom_call.1} parent=1 // pred_check_branch
      %73 = sbr.rel (0) target = $region25
    $region24: #{tpu_custom_call.1} parent=1 // pred_region
      %74 = dma.done [#allocation3], 128
    $region25: #{tpu_custom_call.1} parent=1 // pred_fallthru
      _
    // Predicated region
    $region26: #{tpu_custom_call.1} parent=1 // pred_check
      _
    $region27: #{tpu_custom_call.1} parent=1 // pred_check_branch
      %76 = sbr.rel (0) target = $region29
    $region28: #{tpu_custom_call.1} parent=1 // pred_region
      %77 = dma.done [#allocation6], 256
    $region29: #{tpu_custom_call.1} parent=1 // pred_fallthru
      _
    // Predicated region
    $region30: #{tpu_custom_call.1} parent=1 // pred_check
      _
    $region31: #{tpu_custom_call.1} parent=1 // pred_check_branch
      %79 = sbr.rel (0) target = $region33
    $region32: #{tpu_custom_call.1} parent=1 // pred_region
      %80 = dma.done [#allocation6], 64
    $region33: #{tpu_custom_call.1} parent=1 // pred_fallthru
      _
    // Predicated region
    $region34: #{tpu_custom_call.1} parent=1 // pred_check
      _
    $region35: #{tpu_custom_call.1} parent=1 // pred_check_branch
      %82 = sbr.rel (0) target = $region37
    $region36: #{tpu_custom_call.1} parent=1 // pred_region
      %83 = dma.done [#allocation9], 256
    $region37: #{tpu_custom_call.1} parent=1 // pred_fallthru
      _
    // Predicated region
    $region38: #{tpu_custom_call.1} parent=1 // pred_check
      _
    $region39: #{tpu_custom_call.1} parent=1 // pred_check_branch
      %85 = sbr.rel (0) target = $region41
    $region40: #{tpu_custom_call.1} parent=1 // pred_region
      %86 = dma.done [#allocation9], 256
    $region41: #{tpu_custom_call.1} parent=1 // pred_fallthru
      _
    %v88 = vld [vmem:[#allocation2] sm:$0xf]
    %v89 = vld [vmem:[#allocation2 + $0x4] sm:$0xf]
    %v90 = vld [vmem:[#allocation5] sm:$0xf]
    %v91 = vld [vmem:[#allocation5 + $0x4] sm:$0xf]
    %v92 = vld [vmem:[#allocation5 + $0x8] sm:$0xf]
    %v93 = vld [vmem:[#allocation5 + $0xc] sm:$0xf]
    %v94 = vld [vmem:[#allocation7] sm:$0x1]
    %v95 = vlaneseq
    %v96 = vshrl.u32 %v95, 7
    %v97 = vsub.s32 0, %v96
    %v98 = vrot.slane %v94, %v97
    %v101 = vunpack.c.l.b16 %v88
    %v102 = vunpack.c.l.b16 %v89
    %v103 = vpack.c.b16 %v102, %v101
    %v108 = vunpack.c.l.b16 %v90
    %v109 = vunpack.c.l.b16 %v91
    %v110 = vunpack.c.l.b16 %v92
    %v111 = vunpack.c.l.b16 %v93
    %v112 = vpack.c.b16 %v109, %v108
    %v113 = vpack.c.b16 %v111, %v110
    %vm116 = vcmask 261120
    %v118 = vsel %vm116, %v103, 0
    %120 = vmatprep.subr.bf16.mxu0 0
    %121 = vmatpush1.bf16.msra.mxu0 %v112
    %122 = vmatprep.subr.bf16.mxu0 0
    %123 = vmatpush1.bf16.msra.mxu0 %v113
    %124 = vmatprep.subr.bf16.mxu0 0
    %125 = vmatpush1.bf16.msra.mxu0 0
    %126 = vmatprep.subr.bf16.mxu0 0
    %127 = vmatpush1.bf16.msra.mxu0 0
    %128 = vmatprep.subr.bf16.mxu0 0
    %129 = vmatpush1.bf16.msra.mxu0 0
    %130 = vmatprep.subr.bf16.mxu0 0
    %131 = vmatpush1.bf16.msra.mxu0 0
    %132 = vmatprep.subr.bf16.mxu0 0
    %133 = vmatpush1.bf16.msra.mxu0 0
    %134 = vmatprep.subr.bf16.mxu0 0
    %135 = vmatpush1.bf16.msra.mxu0 0
    %136 = vmatprep.subr.bf16.mxu0 0
    %137 = vmatpush1.bf16.msra.mxu0 0
    %138 = vmatprep.subr.bf16.mxu0 0
    %139 = vmatpush1.bf16.msra.mxu0 0
    %140 = vmatprep.subr.bf16.mxu0 0
    %141 = vmatpush1.bf16.msra.mxu0 0
    %142 = vmatprep.subr.bf16.mxu0 0
    %143 = vmatpush1.bf16.msra.mxu0 0
    %144 = vmatprep.subr.bf16.mxu0 0
    %145 = vmatpush1.bf16.msra.mxu0 0
    %146 = vmatprep.subr.bf16.mxu0 0
    %147 = vmatpush1.bf16.msra.mxu0 0
    %148 = vmatprep.subr.bf16.mxu0 0
    %149 = vmatpush1.bf16.msra.mxu0 0
    %150 = vmatprep.subr.bf16.mxu0 0
    %151 = vmatpush1.bf16.msra.mxu0 0
    %152 = vmatprep.mubr.bf16.mxu0 0
    %153 = vmatmul.mubr.bf16.gmra.mrb[0].mxu0 %v118
    %v154 = vpop.f32.mrb[0].mxu0
    %v155 = vadd.f32 %v98, %v154
    %v156 = vpop.f32.mrb[0].mxu0
    %v157 = vpop.f32.mrb[0].mxu0
    %v158 = vadd.f32 %v98, %v157
    %v159 = vpop.f32.mrb[0].mxu0
    %160 = vdwg.mxu0
    %v161 = vld [vmem:[#allocation8] sm:$0xff]
    %v162 = vld [vmem:[#allocation8 + $0x8] sm:$0xff]
    %v163 = vadd.f32 %v155, %v161
    %v164 = vadd.f32 %v158, %v162
    %v165 = vld [vmem:[#allocation10] sm:$0xff]
    %v166 = vld [vmem:[#allocation10 + $0x8] sm:$0xff]
    %v167 = vadd.f32 %v163, %v165
    %v168 = vadd.f32 %v164, %v166
    %v169 = vsel %vm116, %v167, 0.0
    %170 = vadd.xlane.f32.xlu0 %v169
    %v171 = vpop.xlane.xlu0 %170
    %v172 = vsel %vm116, %v168, 0.0
    %173 = vadd.xlane.f32.xlu0 %v172
    %v174 = vpop.xlane.xlu0 %173
    %v175 = vmul.f32 %v171, 0.03125
    %v176 = vmul.f32 %v174, 0.03125
    %v177 = vsub.f32 %v167, %v175
    %v178 = vsub.f32 %v168, %v176
    %v179 = vmul.f32 %v177, %v177
    %v180 = vmul.f32 %v178, %v178
    %v181 = vsel %vm116, %v179, 0.0
    %182 = vadd.xlane.f32.xlu0 %v181
    %v183 = vpop.xlane.xlu0 %182
    %v184 = vsel %vm116, %v180, 0.0
    %185 = vadd.xlane.f32.xlu0 %v184
    %v186 = vpop.xlane.xlu0 %185
    %v187 = vmul.f32 %v183, 0.03125
    %v188 = vmul.f32 %v186, 0.03125
    %v189 = vadd.f32 %v187, 1e-05
    %v190 = vadd.f32 %v188, 1e-05
    %v191 = vrsqrt.pop %v189
    %v192 = vrsqrt.pop %v190
    %v193 = vmul.f32 %v177, %v191
    %v194 = vmul.f32 %v178, %v192
    %v195 = vld [vmem:[#allocation7 + $0x1] sm:$0x1]
    %v196 = vlaneseq
    %v197 = vshrl.u32 %v196, 7
    %v198 = vsub.s32 0, %v197
    %v199 = vrot.slane %v195, %v198
    %v200 = vmul.f32 %v193, %v199
    %v201 = vmul.f32 %v194, %v199
    %v202 = vld [vmem:[#allocation7 + $0x2] sm:$0x1]
    %v203 = vlaneseq
    %v204 = vshrl.u32 %v203, 7
    %v205 = vsub.s32 0, %v204
    %v206 = vrot.slane %v202, %v205
    %v207 = vadd.f32 %v200, %v206
    %v208 = vadd.f32 %v201, %v206
    %209 = vst.msk [vmem:[#allocation11] sm:$0xff] %vm116, %v207
    %210 = vst.msk [vmem:[#allocation11 + $0x8] sm:$0xff] %vm116, %v208
    // Predicated region
    $region42: #{tpu_custom_call.1} parent=1 // pred_check
      _
    $region43: #{tpu_custom_call.1} parent=1 // pred_check_branch
      %212 = sbr.rel (0) target = $region45
    $region44: #{tpu_custom_call.1} parent=1 // pred_region
      %s214 = ssub.s32 256, 256
      %215 = vsyncadd [#allocation4], %s214
      %s216 = sshll.u32 [#allocation11], 4
      %s217 = int_to_ptr.vmem [resolvable:$true] %s216
      %222 = dma.vmem_to_hbm [thread:$0]  %s217, 256, %s5, [#allocation4], 128, 128, 8
    $region45: #{tpu_custom_call.1} parent=1 // pred_fallthru
      _
    // Predicated region
    $region46: #{tpu_custom_call.1} parent=1 // pred_check
      _
    $region47: #{tpu_custom_call.1} parent=1 // pred_check_branch
      %224 = sbr.rel (0) target = $region49
    $region48: #{tpu_custom_call.1} parent=1 // pred_region
      %225 = dma.done [#allocation4], 256
    $region49: #{tpu_custom_call.1} parent=1 // pred_fallthru
      _
    %226 = vsyncpa [#allocation3], 1
    %227 = vsyncpa [#allocation6], 1
    %228 = vsyncpa [#allocation9], 1
    %229 = vsyncpa [#allocation4], 1

</llo_original>
